<compile_context>
chip_gen: v7x
topology: tpu7x:2x2x1
jax: 0.10.0
libtpu: 0.0.40
codegen_flags: <defaults>
</compile_context>

<pallas_src>
import numpy as np
import jax
import jax.numpy as jnp
from jax.experimental import pallas as pl
from jax.experimental.pallas import tpu as pltpu


def embedding_kernel(ids_ref, tbl_ref, out_ref):
    """ids_ref: SMEM (B*S,) int32 (scalar-prefetch);
    tbl_ref: VMEM (V, 1, E) embedding table (fully resident);
    out_ref: VMEM (rows, 1, E) block of the gathered output."""
    rows = out_ref.shape[0]
    base = pl.program_id(0) * rows
    for r in range(rows):                 # static unroll: rows = B*S per step (small)
        idx = ids_ref[base + r]           # cheap scalar read from SMEM
        out_ref[r] = tbl_ref[idx]         # (1, E) row copy, dynamic leading-dim index


def embedding_forward(x_ids, table):
    """nn.Embedding forward: gather rows of `table` (V, E) at `x_ids` (B, S) -> (B, S, E)."""
    V, E = table.shape
    B, S = x_ids.shape
    BS = B * S

    ids = x_ids.reshape(BS).astype(jnp.int32)     # fold batch+seq into one row axis
    tbl3 = table.reshape(V, 1, E)                 # leading gather axis, lane-dense (1, E) rows

    rows_per_step = BS                            # whole lookup in a single grid step
    assert BS % rows_per_step == 0
    grid = (BS // rows_per_step,)

    out = pl.pallas_call(
        embedding_kernel,
        out_shape=jax.ShapeDtypeStruct((BS, 1, E), table.dtype),
        grid_spec=pltpu.PrefetchScalarGridSpec(
            num_scalar_prefetch=1,                # token ids land in SMEM before the grid runs
            grid=grid,
            # whole (V, 1, E) table kept VMEM-resident (block index constant)
            in_specs=[pl.BlockSpec((V, 1, E), lambda i, ids_ref: (0, 0, 0))],
            out_specs=pl.BlockSpec((rows_per_step, 1, E), lambda i, ids_ref: (i, 0, 0)),
        ),
        compiler_params=pltpu.CompilerParams(dimension_semantics=("arbitrary",)),
    )(ids, tbl3)

    return out.reshape(B, S, E)


if __name__ == "__main__":
    # Small shapes consistent with the module: Embedding(vocab_size=32, embed_dim=128),
    # token ids of shape (batch=2, seq=8). embed_dim chosen lane-dense (multiple of 128).
    B, S, V, E = 2, 8, 32, 128

    key = jax.random.PRNGKey(0)
    k_w, k_ids = jax.random.split(key)
    table = jax.random.normal(k_w, (V, E), jnp.float32)        # nn.Embedding.weight ~ N(0, 1)
    x_ids = jax.random.randint(k_ids, (B, S), 0, V, dtype=jnp.int32)

    out = embedding_forward(x_ids, table)
    out = jax.block_until_ready(out)

    assert out.shape == (B, S, E) and out.dtype == jnp.float32

    ref = jnp.take(table, x_ids, axis=0)                       # pure-JAX reference gather
    assert np.array_equal(np.asarray(out), np.asarray(ref)), \
        "Pallas embedding output does not match reference gather"

    print("KERNEL_OK")
</pallas_src>

<mosaic_0001>
module attributes {stable_mosaic.version = 11 : i64} {
  func.func @embedding_kernel(%arg0: i32, %arg1: memref<16xi32, #tpu.memory_space<smem>>, %arg2: memref<32x1x128xf32, #tpu.memory_space<vmem>>, %arg3: memref<16x1x128xf32, #tpu.memory_space<vmem>>) attributes {dimension_semantics = [#tpu.dimension_semantics<arbitrary>], iteration_bounds = array<i64: 1>, scalar_prefetch = 1 : i64, scratch_operands = 0 : i64, tpu.core_type = #tpu.core_type<tc>, window_params = [{pipeline_mode = #tpu.pipeline_mode<synchronous>, transform_indices = @transform_0, window_bounds = array<i64: 32, 1, 128>}, {transform_indices = @transform_1, window_bounds = array<i64: 16, 1, 128>}]} {
    %c16_i32 = arith.constant 16 : i32
    %0 = arith.muli %arg0, %c16_i32 : i32
    %c0_i32 = arith.constant 0 : i32
    %1 = arith.addi %0, %c0_i32 : i32
    %2 = arith.index_cast %1 : i32 to index
    %3 = memref.load %arg1[%2] : memref<16xi32, #tpu.memory_space<smem>>
    %4 = arith.index_cast %3 : i32 to index
    %c0 = arith.constant 0 : index
    %c0_0 = arith.constant 0 : index
    %5 = vector.load %arg2[%4, %c0, %c0_0] : memref<32x1x128xf32, #tpu.memory_space<vmem>>, vector<1x1x128xf32>
    %6 = vector.shape_cast %5 : vector<1x1x128xf32> to vector<1x128xf32>
    %c0_1 = arith.constant 0 : index
    %c0_2 = arith.constant 0 : index
    %c0_3 = arith.constant 0 : index
    %7 = vector.load %arg3[%c0_1, %c0_2, %c0_3] : memref<16x1x128xf32, #tpu.memory_space<vmem>>, vector<1x1x128xf32>
    %8 = vector.shape_cast %7 : vector<1x1x128xf32> to vector<1x128xf32>
    %9 = vector.shape_cast %6 : vector<1x128xf32> to vector<1x1x128xf32>
    tpu.vector_store %arg3[%c0_1, %c0_2, %c0_3], %9 {strides = array<i32>} : memref<16x1x128xf32, #tpu.memory_space<vmem>>, vector<1x1x128xf32>,
    %c1_i32 = arith.constant 1 : i32
    %10 = arith.addi %0, %c1_i32 : i32
    %11 = arith.index_cast %10 : i32 to index
    %12 = memref.load %arg1[%11] : memref<16xi32, #tpu.memory_space<smem>>
    %13 = arith.index_cast %12 : i32 to index
    %c0_4 = arith.constant 0 : index
    %c0_5 = arith.constant 0 : index
    %14 = vector.load %arg2[%13, %c0_4, %c0_5] : memref<32x1x128xf32, #tpu.memory_space<vmem>>, vector<1x1x128xf32>
    %15 = vector.shape_cast %14 : vector<1x1x128xf32> to vector<1x128xf32>
    %c1 = arith.constant 1 : index
    %c0_6 = arith.constant 0 : index
    %c0_7 = arith.constant 0 : index
    %16 = vector.load %arg3[%c1, %c0_6, %c0_7] : memref<16x1x128xf32, #tpu.memory_space<vmem>>, vector<1x1x128xf32>
    %17 = vector.shape_cast %16 : vector<1x1x128xf32> to vector<1x128xf32>
    %18 = vector.shape_cast %15 : vector<1x128xf32> to vector<1x1x128xf32>
    tpu.vector_store %arg3[%c1, %c0_6, %c0_7], %18 {strides = array<i32>} : memref<16x1x128xf32, #tpu.memory_space<vmem>>, vector<1x1x128xf32>,
    %c2_i32 = arith.constant 2 : i32
    %19 = arith.addi %0, %c2_i32 : i32
    %20 = arith.index_cast %19 : i32 to index
    %21 = memref.load %arg1[%20] : memref<16xi32, #tpu.memory_space<smem>>
    %22 = arith.index_cast %21 : i32 to index
    %c0_8 = arith.constant 0 : index
    %c0_9 = arith.constant 0 : index
    %23 = vector.load %arg2[%22, %c0_8, %c0_9] : memref<32x1x128xf32, #tpu.memory_space<vmem>>, vector<1x1x128xf32>
    %24 = vector.shape_cast %23 : vector<1x1x128xf32> to vector<1x128xf32>
    %c2 = arith.constant 2 : index
    %c0_10 = arith.constant 0 : index
    %c0_11 = arith.constant 0 : index
    %25 = vector.load %arg3[%c2, %c0_10, %c0_11] : memref<16x1x128xf32, #tpu.memory_space<vmem>>, vector<1x1x128xf32>
    %26 = vector.shape_cast %25 : vector<1x1x128xf32> to vector<1x128xf32>
    %27 = vector.shape_cast %24 : vector<1x128xf32> to vector<1x1x128xf32>
    tpu.vector_store %arg3[%c2, %c0_10, %c0_11], %27 {strides = array<i32>} : memref<16x1x128xf32, #tpu.memory_space<vmem>>, vector<1x1x128xf32>,
    %c3_i32 = arith.constant 3 : i32
    %28 = arith.addi %0, %c3_i32 : i32
    %29 = arith.index_cast %28 : i32 to index
    %30 = memref.load %arg1[%29] : memref<16xi32, #tpu.memory_space<smem>>
    %31 = arith.index_cast %30 : i32 to index
    %c0_12 = arith.constant 0 : index
    %c0_13 = arith.constant 0 : index
    %32 = vector.load %arg2[%31, %c0_12, %c0_13] : memref<32x1x128xf32, #tpu.memory_space<vmem>>, vector<1x1x128xf32>
    %33 = vector.shape_cast %32 : vector<1x1x128xf32> to vector<1x128xf32>
    %c3 = arith.constant 3 : index
    %c0_14 = arith.constant 0 : index
    %c0_15 = arith.constant 0 : index
    %34 = vector.load %arg3[%c3, %c0_14, %c0_15] : memref<16x1x128xf32, #tpu.memory_space<vmem>>, vector<1x1x128xf32>
    %35 = vector.shape_cast %34 : vector<1x1x128xf32> to vector<1x128xf32>
    %36 = vector.shape_cast %33 : vector<1x128xf32> to vector<1x1x128xf32>
    tpu.vector_store %arg3[%c3, %c0_14, %c0_15], %36 {strides = array<i32>} : memref<16x1x128xf32, #tpu.memory_space<vmem>>, vector<1x1x128xf32>,
    %c4_i32 = arith.constant 4 : i32
    %37 = arith.addi %0, %c4_i32 : i32
    %38 = arith.index_cast %37 : i32 to index
    %39 = memref.load %arg1[%38] : memref<16xi32, #tpu.memory_space<smem>>
    %40 = arith.index_cast %39 : i32 to index
    %c0_16 = arith.constant 0 : index
    %c0_17 = arith.constant 0 : index
    %41 = vector.load %arg2[%40, %c0_16, %c0_17] : memref<32x1x128xf32, #tpu.memory_space<vmem>>, vector<1x1x128xf32>
    %42 = vector.shape_cast %41 : vector<1x1x128xf32> to vector<1x128xf32>
    %c4 = arith.constant 4 : index
    %c0_18 = arith.constant 0 : index
    %c0_19 = arith.constant 0 : index
    %43 = vector.load %arg3[%c4, %c0_18, %c0_19] : memref<16x1x128xf32, #tpu.memory_space<vmem>>, vector<1x1x128xf32>
    %44 = vector.shape_cast %43 : vector<1x1x128xf32> to vector<1x128xf32>
    %45 = vector.shape_cast %42 : vector<1x128xf32> to vector<1x1x128xf32>
    tpu.vector_store %arg3[%c4, %c0_18, %c0_19], %45 {strides = array<i32>} : memref<16x1x128xf32, #tpu.memory_space<vmem>>, vector<1x1x128xf32>,
    %c5_i32 = arith.constant 5 : i32
    %46 = arith.addi %0, %c5_i32 : i32
    %47 = arith.index_cast %46 : i32 to index
    %48 = memref.load %arg1[%47] : memref<16xi32, #tpu.memory_space<smem>>
    %49 = arith.index_cast %48 : i32 to index
    %c0_20 = arith.constant 0 : index
    %c0_21 = arith.constant 0 : index
    %50 = vector.load %arg2[%49, %c0_20, %c0_21] : memref<32x1x128xf32, #tpu.memory_space<vmem>>, vector<1x1x128xf32>
    %51 = vector.shape_cast %50 : vector<1x1x128xf32> to vector<1x128xf32>
    %c5 = arith.constant 5 : index
    %c0_22 = arith.constant 0 : index
    %c0_23 = arith.constant 0 : index
    %52 = vector.load %arg3[%c5, %c0_22, %c0_23] : memref<16x1x128xf32, #tpu.memory_space<vmem>>, vector<1x1x128xf32>
    %53 = vector.shape_cast %52 : vector<1x1x128xf32> to vector<1x128xf32>
    %54 = vector.shape_cast %51 : vector<1x128xf32> to vector<1x1x128xf32>
    tpu.vector_store %arg3[%c5, %c0_22, %c0_23], %54 {strides = array<i32>} : memref<16x1x128xf32, #tpu.memory_space<vmem>>, vector<1x1x128xf32>,
    %c6_i32 = arith.constant 6 : i32
    %55 = arith.addi %0, %c6_i32 : i32
    %56 = arith.index_cast %55 : i32 to index
    %57 = memref.load %arg1[%56] : memref<16xi32, #tpu.memory_space<smem>>
    %58 = arith.index_cast %57 : i32 to index
    %c0_24 = arith.constant 0 : index
    %c0_25 = arith.constant 0 : index
    %59 = vector.load %arg2[%58, %c0_24, %c0_25] : memref<32x1x128xf32, #tpu.memory_space<vmem>>, vector<1x1x128xf32>
    %60 = vector.shape_cast %59 : vector<1x1x128xf32> to vector<1x128xf32>
    %c6 = arith.constant 6 : index
    %c0_26 = arith.constant 0 : index
    %c0_27 = arith.constant 0 : index
    %61 = vector.load %arg3[%c6, %c0_26, %c0_27] : memref<16x1x128xf32, #tpu.memory_space<vmem>>, vector<1x1x128xf32>
    %62 = vector.shape_cast %61 : vector<1x1x128xf32> to vector<1x128xf32>
    %63 = vector.shape_cast %60 : vector<1x128xf32> to vector<1x1x128xf32>
    tpu.vector_store %arg3[%c6, %c0_26, %c0_27], %63 {strides = array<i32>} : memref<16x1x128xf32, #tpu.memory_space<vmem>>, vector<1x1x128xf32>,
    %c7_i32 = arith.constant 7 : i32
    %64 = arith.addi %0, %c7_i32 : i32
    %65 = arith.index_cast %64 : i32 to index
    %66 = memref.load %arg1[%65] : memref<16xi32, #tpu.memory_space<smem>>
    %67 = arith.index_cast %66 : i32 to index
    %c0_28 = arith.constant 0 : index
    %c0_29 = arith.constant 0 : index
    %68 = vector.load %arg2[%67, %c0_28, %c0_29] : memref<32x1x128xf32, #tpu.memory_space<vmem>>, vector<1x1x128xf32>
    %69 = vector.shape_cast %68 : vector<1x1x128xf32> to vector<1x128xf32>
    %c7 = arith.constant 7 : index
    %c0_30 = arith.constant 0 : index
    %c0_31 = arith.constant 0 : index
    %70 = vector.load %arg3[%c7, %c0_30, %c0_31] : memref<16x1x128xf32, #tpu.memory_space<vmem>>, vector<1x1x128xf32>
    %71 = vector.shape_cast %70 : vector<1x1x128xf32> to vector<1x128xf32>
    %72 = vector.shape_cast %69 : vector<1x128xf32> to vector<1x1x128xf32>
    tpu.vector_store %arg3[%c7, %c0_30, %c0_31], %72 {strides = array<i32>} : memref<16x1x128xf32, #tpu.memory_space<vmem>>, vector<1x1x128xf32>,
    %c8_i32 = arith.constant 8 : i32
    %73 = arith.addi %0, %c8_i32 : i32
    %74 = arith.index_cast %73 : i32 to index
    %75 = memref.load %arg1[%74] : memref<16xi32, #tpu.memory_space<smem>>
    %76 = arith.index_cast %75 : i32 to index
    %c0_32 = arith.constant 0 : index
    %c0_33 = arith.constant 0 : index
    %77 = vector.load %arg2[%76, %c0_32, %c0_33] : memref<32x1x128xf32, #tpu.memory_space<vmem>>, vector<1x1x128xf32>
    %78 = vector.shape_cast %77 : vector<1x1x128xf32> to vector<1x128xf32>
    %c8 = arith.constant 8 : index
    %c0_34 = arith.constant 0 : index
    %c0_35 = arith.constant 0 : index
    %79 = vector.load %arg3[%c8, %c0_34, %c0_35] : memref<16x1x128xf32, #tpu.memory_space<vmem>>, vector<1x1x128xf32>
    %80 = vector.shape_cast %79 : vector<1x1x128xf32> to vector<1x128xf32>
    %81 = vector.shape_cast %78 : vector<1x128xf32> to vector<1x1x128xf32>
    tpu.vector_store %arg3[%c8, %c0_34, %c0_35], %81 {strides = array<i32>} : memref<16x1x128xf32, #tpu.memory_space<vmem>>, vector<1x1x128xf32>,
    %c9_i32 = arith.constant 9 : i32
    %82 = arith.addi %0, %c9_i32 : i32
    %83 = arith.index_cast %82 : i32 to index
    %84 = memref.load %arg1[%83] : memref<16xi32, #tpu.memory_space<smem>>
    %85 = arith.index_cast %84 : i32 to index
    %c0_36 = arith.constant 0 : index
    %c0_37 = arith.constant 0 : index
    %86 = vector.load %arg2[%85, %c0_36, %c0_37] : memref<32x1x128xf32, #tpu.memory_space<vmem>>, vector<1x1x128xf32>
    %87 = vector.shape_cast %86 : vector<1x1x128xf32> to vector<1x128xf32>
    %c9 = arith.constant 9 : index
    %c0_38 = arith.constant 0 : index
    %c0_39 = arith.constant 0 : index
    %88 = vector.load %arg3[%c9, %c0_38, %c0_39] : memref<16x1x128xf32, #tpu.memory_space<vmem>>, vector<1x1x128xf32>
    %89 = vector.shape_cast %88 : vector<1x1x128xf32> to vector<1x128xf32>
    %90 = vector.shape_cast %87 : vector<1x128xf32> to vector<1x1x128xf32>
    tpu.vector_store %arg3[%c9, %c0_38, %c0_39], %90 {strides = array<i32>} : memref<16x1x128xf32, #tpu.memory_space<vmem>>, vector<1x1x128xf32>,
    %c10_i32 = arith.constant 10 : i32
    %91 = arith.addi %0, %c10_i32 : i32
    %92 = arith.index_cast %91 : i32 to index
    %93 = memref.load %arg1[%92] : memref<16xi32, #tpu.memory_space<smem>>
    %94 = arith.index_cast %93 : i32 to index
    %c0_40 = arith.constant 0 : index
    %c0_41 = arith.constant 0 : index
    %95 = vector.load %arg2[%94, %c0_40, %c0_41] : memref<32x1x128xf32, #tpu.memory_space<vmem>>, vector<1x1x128xf32>
    %96 = vector.shape_cast %95 : vector<1x1x128xf32> to vector<1x128xf32>
    %c10 = arith.constant 10 : index
    %c0_42 = arith.constant 0 : index
    %c0_43 = arith.constant 0 : index
    %97 = vector.load %arg3[%c10, %c0_42, %c0_43] : memref<16x1x128xf32, #tpu.memory_space<vmem>>, vector<1x1x128xf32>
    %98 = vector.shape_cast %97 : vector<1x1x128xf32> to vector<1x128xf32>
    %99 = vector.shape_cast %96 : vector<1x128xf32> to vector<1x1x128xf32>
    tpu.vector_store %arg3[%c10, %c0_42, %c0_43], %99 {strides = array<i32>} : memref<16x1x128xf32, #tpu.memory_space<vmem>>, vector<1x1x128xf32>,
    %c11_i32 = arith.constant 11 : i32
    %100 = arith.addi %0, %c11_i32 : i32
    %101 = arith.index_cast %100 : i32 to index
    %102 = memref.load %arg1[%101] : memref<16xi32, #tpu.memory_space<smem>>
    %103 = arith.index_cast %102 : i32 to index
    %c0_44 = arith.constant 0 : index
    %c0_45 = arith.constant 0 : index
    %104 = vector.load %arg2[%103, %c0_44, %c0_45] : memref<32x1x128xf32, #tpu.memory_space<vmem>>, vector<1x1x128xf32>
    %105 = vector.shape_cast %104 : vector<1x1x128xf32> to vector<1x128xf32>
    %c11 = arith.constant 11 : index
    %c0_46 = arith.constant 0 : index
    %c0_47 = arith.constant 0 : index
    %106 = vector.load %arg3[%c11, %c0_46, %c0_47] : memref<16x1x128xf32, #tpu.memory_space<vmem>>, vector<1x1x128xf32>
    %107 = vector.shape_cast %106 : vector<1x1x128xf32> to vector<1x128xf32>
    %108 = vector.shape_cast %105 : vector<1x128xf32> to vector<1x1x128xf32>
    tpu.vector_store %arg3[%c11, %c0_46, %c0_47], %108 {strides = array<i32>} : memref<16x1x128xf32, #tpu.memory_space<vmem>>, vector<1x1x128xf32>,
    %c12_i32 = arith.constant 12 : i32
    %109 = arith.addi %0, %c12_i32 : i32
    %110 = arith.index_cast %109 : i32 to index
    %111 = memref.load %arg1[%110] : memref<16xi32, #tpu.memory_space<smem>>
    %112 = arith.index_cast %111 : i32 to index
    %c0_48 = arith.constant 0 : index
    %c0_49 = arith.constant 0 : index
    %113 = vector.load %arg2[%112, %c0_48, %c0_49] : memref<32x1x128xf32, #tpu.memory_space<vmem>>, vector<1x1x128xf32>
    %114 = vector.shape_cast %113 : vector<1x1x128xf32> to vector<1x128xf32>
    %c12 = arith.constant 12 : index
    %c0_50 = arith.constant 0 : index
    %c0_51 = arith.constant 0 : index
    %115 = vector.load %arg3[%c12, %c0_50, %c0_51] : memref<16x1x128xf32, #tpu.memory_space<vmem>>, vector<1x1x128xf32>
    %116 = vector.shape_cast %115 : vector<1x1x128xf32> to vector<1x128xf32>
    %117 = vector.shape_cast %114 : vector<1x128xf32> to vector<1x1x128xf32>
    tpu.vector_store %arg3[%c12, %c0_50, %c0_51], %117 {strides = array<i32>} : memref<16x1x128xf32, #tpu.memory_space<vmem>>, vector<1x1x128xf32>,
    %c13_i32 = arith.constant 13 : i32
    %118 = arith.addi %0, %c13_i32 : i32
    %119 = arith.index_cast %118 : i32 to index
    %120 = memref.load %arg1[%119] : memref<16xi32, #tpu.memory_space<smem>>
    %121 = arith.index_cast %120 : i32 to index
    %c0_52 = arith.constant 0 : index
    %c0_53 = arith.constant 0 : index
    %122 = vector.load %arg2[%121, %c0_52, %c0_53] : memref<32x1x128xf32, #tpu.memory_space<vmem>>, vector<1x1x128xf32>
    %123 = vector.shape_cast %122 : vector<1x1x128xf32> to vector<1x128xf32>
    %c13 = arith.constant 13 : index
    %c0_54 = arith.constant 0 : index
    %c0_55 = arith.constant 0 : index
    %124 = vector.load %arg3[%c13, %c0_54, %c0_55] : memref<16x1x128xf32, #tpu.memory_space<vmem>>, vector<1x1x128xf32>
    %125 = vector.shape_cast %124 : vector<1x1x128xf32> to vector<1x128xf32>
    %126 = vector.shape_cast %123 : vector<1x128xf32> to vector<1x1x128xf32>
    tpu.vector_store %arg3[%c13, %c0_54, %c0_55], %126 {strides = array<i32>} : memref<16x1x128xf32, #tpu.memory_space<vmem>>, vector<1x1x128xf32>,
    %c14_i32 = arith.constant 14 : i32
    %127 = arith.addi %0, %c14_i32 : i32
    %128 = arith.index_cast %127 : i32 to index
    %129 = memref.load %arg1[%128] : memref<16xi32, #tpu.memory_space<smem>>
    %130 = arith.index_cast %129 : i32 to index
    %c0_56 = arith.constant 0 : index
    %c0_57 = arith.constant 0 : index
    %131 = vector.load %arg2[%130, %c0_56, %c0_57] : memref<32x1x128xf32, #tpu.memory_space<vmem>>, vector<1x1x128xf32>
    %132 = vector.shape_cast %131 : vector<1x1x128xf32> to vector<1x128xf32>
    %c14 = arith.constant 14 : index
    %c0_58 = arith.constant 0 : index
    %c0_59 = arith.constant 0 : index
    %133 = vector.load %arg3[%c14, %c0_58, %c0_59] : memref<16x1x128xf32, #tpu.memory_space<vmem>>, vector<1x1x128xf32>
    %134 = vector.shape_cast %133 : vector<1x1x128xf32> to vector<1x128xf32>
    %135 = vector.shape_cast %132 : vector<1x128xf32> to vector<1x1x128xf32>
    tpu.vector_store %arg3[%c14, %c0_58, %c0_59], %135 {strides = array<i32>} : memref<16x1x128xf32, #tpu.memory_space<vmem>>, vector<1x1x128xf32>,
    %c15_i32 = arith.constant 15 : i32
    %136 = arith.addi %0, %c15_i32 : i32
    %137 = arith.index_cast %136 : i32 to index
    %138 = memref.load %arg1[%137] : memref<16xi32, #tpu.memory_space<smem>>
    %139 = arith.index_cast %138 : i32 to index
    %c0_60 = arith.constant 0 : index
    %c0_61 = arith.constant 0 : index
    %140 = vector.load %arg2[%139, %c0_60, %c0_61] : memref<32x1x128xf32, #tpu.memory_space<vmem>>, vector<1x1x128xf32>
    %141 = vector.shape_cast %140 : vector<1x1x128xf32> to vector<1x128xf32>
    %c15 = arith.constant 15 : index
    %c0_62 = arith.constant 0 : index
    %c0_63 = arith.constant 0 : index
    %142 = vector.load %arg3[%c15, %c0_62, %c0_63] : memref<16x1x128xf32, #tpu.memory_space<vmem>>, vector<1x1x128xf32>
    %143 = vector.shape_cast %142 : vector<1x1x128xf32> to vector<1x128xf32>
    %144 = vector.shape_cast %141 : vector<1x128xf32> to vector<1x1x128xf32>
    tpu.vector_store %arg3[%c15, %c0_62, %c0_63], %144 {strides = array<i32>} : memref<16x1x128xf32, #tpu.memory_space<vmem>>, vector<1x1x128xf32>,
    return
  }
  func.func @transform_0(%arg0: i32, %arg1: memref<16xi32, #tpu.memory_space<smem>>) -> (i32, i32, i32) {
    %c0_i32 = arith.constant 0 : i32
    %c0_i32_0 = arith.constant 0 : i32
    %c0_i32_1 = arith.constant 0 : i32
    %c0_i32_2 = arith.constant 0 : i32
    return %c0_i32, %c0_i32_0, %c0_i32_1 : i32, i32, i32
  }
  func.func @transform_1(%arg0: i32, %arg1: memref<16xi32, #tpu.memory_space<smem>>) -> (i32, i32, i32) {
    %c0_i32 = arith.constant 0 : i32
    %c0_i32_0 = arith.constant 0 : i32
    %c0_i32_1 = arith.constant 0 : i32
    return %arg0, %c0_i32, %c0_i32_0 : i32, i32, i32
  }
}

</mosaic_0001>

<llo_original>
// kernel: tpu_custom_call.1
$region0: #{tpu_custom_call.1}
  #allocation0 [shape = 'u32[]', space=smem, size = 0x4, offset = 0x4, fixed_abs, tag = 'smem constant byte address 0x4 - core index']
  #allocation1 [shape = 'u32[144,128]{1,0:T(1,128)}', space=vmem, size = 0x12000, scoped, tag = 'internal scratch']
  #allocation2 [shape = 's32[1]{0}', space=sflag, size = 0x4, scoped, tag = 'scoped memory for tpu_custom_call.1']
  #allocation3 [shape = 'u8[512]{0}', space=smem, size = 0x200, scoped, tag = 'prefetched SMEM operand 0']
  %s0 = inlined_call_operand.hbm [shape: s32[16], index: 0, kind: input, shape index: {}]
  %s1 = inlined_call_operand.hbm [shape: f32[32,1,128], index: 1, kind: input, shape index: {}]
  %s2 = inlined_call_operand.hbm [shape: f32[16,1,128], index: 2, kind: output, shape index: {}]
  %s3 = sld [smem:[#allocation0]]
  $region18: #{tpu_custom_call.1} parent=0
    _
  %s5 = ssub.s32 1, %s3
  %s6 = scalar_select 0, %s5, %s3
  %8 = dma.hbm_to_smem %s0, 16, [#allocation3], [#allocation2]
  %9 = dma.done [#allocation2], 16
  %10 = sfence
  $region1: #{tpu_custom_call.1} parent=0
    #allocation4 [shape = 'u8[16384]{0}', space=vmem, size = 0x4000, scoped, tag = 'input window, operand 1, single buffered']
    #allocation5 [shape = 's32[1]{0}', space=sflag, size = 0x4, scoped, tag = 'scoped memory for tpu_custom_call.1']
    #allocation6 [shape = 's32[1]{0}', space=sflag, size = 0x4, scoped, tag = 'scoped memory for tpu_custom_call.1']
    #allocation7 [shape = 'u8[8192]{0}', space=vmem, size = 0x2000, scoped, tag = 'output window, operand 0, single buffered']
    %11 = vsyncpa [#allocation5], 0
    %12 = vsyncpa [#allocation6], 0
    // Predicated region
    $region2: #{tpu_custom_call.1} parent=1 // pred_check
      _
    $region3: #{tpu_custom_call.1} parent=1 // pred_check_branch
      %14 = sbr.rel (0) target = $region5
    $region4: #{tpu_custom_call.1} parent=1 // pred_region
      %s16 = ssub.s32 512, 512
      %17 = vsyncadd [#allocation5], %s16
      %s18 = sshll.u32 [#allocation4], 4
      %s19 = int_to_ptr.vmem [resolvable:$true] %s18
      %24 = dma.hbm_to_vmem [thread:$0]  %s1, 512, %s19, [#allocation5], 16, 16, 1
    $region5: #{tpu_custom_call.1} parent=1 // pred_fallthru
      _
    // Predicated region
    $region6: #{tpu_custom_call.1} parent=1 // pred_check
      _
    $region7: #{tpu_custom_call.1} parent=1 // pred_check_branch
      %26 = sbr.rel (0) target = $region9
    $region8: #{tpu_custom_call.1} parent=1 // pred_region
      %27 = dma.done [#allocation5], 512
    $region9: #{tpu_custom_call.1} parent=1 // pred_fallthru
      _
    %s28 = smul.u32 0, 16
    %s29 = sld [smem:[#allocation3 + %s28]]
    %s30 = scalar_lea.vmem [#allocation4], %s29
    %v31 = vld [vmem:[%s30] sm:$0x1]
    %32 = vst [vmem:[#allocation7] sm:$0x1] %v31
    %s33 = sadd.s32 %s28, 1
    %s34 = sld [smem:[#allocation3 + %s33]]
    %s35 = scalar_lea.vmem [#allocation4], %s34
    %v36 = vld [vmem:[%s35] sm:$0x1]
    %s37 = scalar_lea.vmem [#allocation7], 1
    %38 = vst [vmem:[%s37] sm:$0x1] %v36
    %s39 = sadd.s32 %s28, 2
    %s40 = sld [smem:[#allocation3 + %s39]]
    %s41 = scalar_lea.vmem [#allocation4], %s40
    %v42 = vld [vmem:[%s41] sm:$0x1]
    %s43 = scalar_lea.vmem [#allocation7], 2
    %44 = vst [vmem:[%s43] sm:$0x1] %v42
    %s45 = sadd.s32 %s28, 3
    %s46 = sld [smem:[#allocation3 + %s45]]
    %s47 = scalar_lea.vmem [#allocation4], %s46
    %v48 = vld [vmem:[%s47] sm:$0x1]
    %s49 = scalar_lea.vmem [#allocation7], 3
    %50 = vst [vmem:[%s49] sm:$0x1] %v48
    %s51 = sadd.s32 %s28, 4
    %s52 = sld [smem:[#allocation3 + %s51]]
    %s53 = scalar_lea.vmem [#allocation4], %s52
    %v54 = vld [vmem:[%s53] sm:$0x1]
    %s55 = scalar_lea.vmem [#allocation7], 4
    %56 = vst [vmem:[%s55] sm:$0x1] %v54
    %s57 = sadd.s32 %s28, 5
    %s58 = sld [smem:[#allocation3 + %s57]]
    %s59 = scalar_lea.vmem [#allocation4], %s58
    %v60 = vld [vmem:[%s59] sm:$0x1]
    %s61 = scalar_lea.vmem [#allocation7], 5
    %62 = vst [vmem:[%s61] sm:$0x1] %v60
    %s63 = sadd.s32 %s28, 6
    %s64 = sld [smem:[#allocation3 + %s63]]
    %s65 = scalar_lea.vmem [#allocation4], %s64
    %v66 = vld [vmem:[%s65] sm:$0x1]
    %s67 = scalar_lea.vmem [#allocation7], 6
    %68 = vst [vmem:[%s67] sm:$0x1] %v66
    %s69 = sadd.s32 %s28, 7
    %s70 = sld [smem:[#allocation3 + %s69]]
    %s71 = scalar_lea.vmem [#allocation4], %s70
    %v72 = vld [vmem:[%s71] sm:$0x1]
    %s73 = scalar_lea.vmem [#allocation7], 7
    %74 = vst [vmem:[%s73] sm:$0x1] %v72
    %s75 = sadd.s32 %s28, 8
    %s76 = sld [smem:[#allocation3 + %s75]]
    %s77 = scalar_lea.vmem [#allocation4], %s76
    %v78 = vld [vmem:[%s77] sm:$0x1]
    %s79 = scalar_lea.vmem [#allocation7], 8
    %80 = vst [vmem:[%s79] sm:$0x1] %v78
    %s81 = sadd.s32 %s28, 9
    %s82 = sld [smem:[#allocation3 + %s81]]
    %s83 = scalar_lea.vmem [#allocation4], %s82
    %v84 = vld [vmem:[%s83] sm:$0x1]
    %s85 = scalar_lea.vmem [#allocation7], 9
    %86 = vst [vmem:[%s85] sm:$0x1] %v84
    %s87 = sadd.s32 %s28, 10
    %s88 = sld [smem:[#allocation3 + %s87]]
    %s89 = scalar_lea.vmem [#allocation4], %s88
    %v90 = vld [vmem:[%s89] sm:$0x1]
    %s91 = scalar_lea.vmem [#allocation7], 10
    %92 = vst [vmem:[%s91] sm:$0x1] %v90
    %s93 = sadd.s32 %s28, 11
    %s94 = sld [smem:[#allocation3 + %s93]]
    %s95 = scalar_lea.vmem [#allocation4], %s94
    %v96 = vld [vmem:[%s95] sm:$0x1]
    %s97 = scalar_lea.vmem [#allocation7], 11
    %98 = vst [vmem:[%s97] sm:$0x1] %v96
    %s99 = sadd.s32 %s28, 12
    %s100 = sld [smem:[#allocation3 + %s99]]
    %s101 = scalar_lea.vmem [#allocation4], %s100
    %v102 = vld [vmem:[%s101] sm:$0x1]
    %s103 = scalar_lea.vmem [#allocation7], 12
    %104 = vst [vmem:[%s103] sm:$0x1] %v102
    %s105 = sadd.s32 %s28, 13
    %s106 = sld [smem:[#allocation3 + %s105]]
    %s107 = scalar_lea.vmem [#allocation4], %s106
    %v108 = vld [vmem:[%s107] sm:$0x1]
    %s109 = scalar_lea.vmem [#allocation7], 13
    %110 = vst [vmem:[%s109] sm:$0x1] %v108
    %s111 = sadd.s32 %s28, 14
    %s112 = sld [smem:[#allocation3 + %s111]]
    %s113 = scalar_lea.vmem [#allocation4], %s112
    %v114 = vld [vmem:[%s113] sm:$0x1]
    %s115 = scalar_lea.vmem [#allocation7], 14
    %116 = vst [vmem:[%s115] sm:$0x1] %v114
    %s117 = sadd.s32 %s28, 15
    %s118 = sld [smem:[#allocation3 + %s117]]
    %s119 = scalar_lea.vmem [#allocation4], %s118
    %v120 = vld [vmem:[%s119] sm:$0x1]
    %s121 = scalar_lea.vmem [#allocation7], 15
    %122 = vst [vmem:[%s121] sm:$0x1] %v120
    // Predicated region
    $region10: #{tpu_custom_call.1} parent=1 // pred_check
      _
    $region11: #{tpu_custom_call.1} parent=1 // pred_check_branch
      %124 = sbr.rel (0) target = $region13
    $region12: #{tpu_custom_call.1} parent=1 // pred_region
      %s126 = ssub.s32 256, 256
      %127 = vsyncadd [#allocation6], %s126
      %s128 = sshll.u32 [#allocation7], 4
      %s129 = int_to_ptr.vmem [resolvable:$true] %s128
      %134 = dma.vmem_to_hbm [thread:$0]  %s129, 256, %s2, [#allocation6], 16, 16, 1
    $region13: #{tpu_custom_call.1} parent=1 // pred_fallthru
      _
    // Predicated region
    $region14: #{tpu_custom_call.1} parent=1 // pred_check
      _
    $region15: #{tpu_custom_call.1} parent=1 // pred_check_branch
      %136 = sbr.rel (0) target = $region17
    $region16: #{tpu_custom_call.1} parent=1 // pred_region
      %137 = dma.done [#allocation6], 256
    $region17: #{tpu_custom_call.1} parent=1 // pred_fallthru
      _
    %138 = vsyncpa [#allocation5], 1
    %139 = vsyncpa [#allocation6], 1

</llo_original>
